<compile_context>
chip_gen: v5e
topology: v5e:2x2
jax: 0.10.0
libtpu: 0.0.40
codegen_flags: <defaults>
</compile_context>

<pallas_src>
import jax
import jax.numpy as jnp
from jax.experimental import pallas as pl
from jax.experimental.pallas import tpu as pltpu


def gcn_kernel(a_ref, d_ref, xw1_ref, b1_ref, w2_ref, b2_ref, dsum_ref, o_ref,
               h1w2_ref, da_ref):
    i = pl.program_id(0)          # A_hat row-block index
    nb = pl.num_programs(0)
    tm = a_ref.shape[0]           # row-block size

    # ---- first block: zero the resident f32 (data @ A) accumulator ----
    @pl.when(i == 0)
    def _():
        da_ref[...] = jnp.zeros_like(da_ref)

    # ---- layer 1 on this row block:  H1[blk] = relu(A[blk] @ XW1 + b1) ----
    h1 = jnp.dot(a_ref[...], xw1_ref[...], preferred_element_type=jnp.float32)
    h1 = jnp.maximum(h1 + b1_ref[...], 0.0)

    # pre-contract with W2 (H1 itself is never materialized in HBM/VMEM scratch)
    h1w2 = jnp.dot(h1.astype(jnp.bfloat16), w2_ref[...],
                   preferred_element_type=jnp.float32)
    row0 = pl.multiple_of(i * tm, tm)
    h1w2_ref[pl.ds(row0, tm), :] = h1w2.astype(jnp.bfloat16)

    # ---- fused final projection (A pass folded in):  DA += data[:, blk] @ A[blk, :] ----
    da_ref[...] += jnp.dot(d_ref[...], a_ref[...],
                           preferred_element_type=jnp.float32)

    # ---- last block:  out = DA @ H1W2 + rowsum(data) * b2  ( == data @ H2 ) ----
    # NOTE: the output VMEM block is written only here; its BlockSpec index is constant
    # so the single HBM writeback happens after this step — keep it that way.
    @pl.when(i == nb - 1)
    def _():
        out = jnp.dot(da_ref[...].astype(jnp.bfloat16), h1w2_ref[...],
                      preferred_element_type=jnp.float32)
        o_ref[...] = out + dsum_ref[...] * b2_ref[...]


def _round_up(v, m):
    return (v + m - 1) // m * m


def _vmem_cap_bytes():
    """Usable scoped-VMEM cap for this generation, with headroom for Mosaic scratch."""
    try:
        phys = int(pltpu.get_tpu_info().vmem_capacity_bytes)
    except Exception:
        phys = 64 << 20          # conservative fallback: v7x per-TensorCore VMEM
    return phys - max(8 << 20, phys // 8)   # ~112 MiB on v5e/v6e, ~56 MiB on v7x


def gcn_forward(data, x, a_hat, w1, b1, w2, b2, *, tm=256):
    """data: [M, N], x: [N, G], a_hat: [N, N], w1: [G, H], b1: [1, H],
       w2: [H, F], b2: [1, F]  ->  out: [M, F] (float32)."""
    M, N = data.shape
    H = w1.shape[1]
    F_dim = w2.shape[1]

    LANE = 128
    bf16, f32 = jnp.bfloat16, jnp.float32

    tm = max(128, min(tm, _round_up(N, LANE)))   # don't tile wider than the padded graph
    n_pad = _round_up(N, tm)
    h_pad = _round_up(H, LANE)
    f_pad = _round_up(F_dim, LANE)
    m_pad = _round_up(M, 8)
    nb = n_pad // tm

    def pad2(v, r, c, dt):
        buf = jnp.zeros((r, c), dt)
        return buf.at[:v.shape[0], :v.shape[1]].set(v.astype(dt))

    # XW1 is a tiny one-shot matmul; doing it here frees resident VMEM and removes the
    # serialized "first block" step inside the kernel (per review).
    xw1 = jnp.dot(x.astype(bf16), w1.astype(bf16),
                  preferred_element_type=jnp.float32).astype(bf16)      # [N, H]
    dsum = data.astype(f32).sum(axis=1, keepdims=True)                  # [M, 1]

    a_p = pad2(a_hat, n_pad, n_pad, bf16)    # streamed row-blocks (bf16 halves HBM bytes)
    d_p = pad2(data, m_pad, n_pad, bf16)     # streamed column-blocks
    xw1_p = pad2(xw1, n_pad, h_pad, bf16)    # resident
    w2_p = pad2(w2, h_pad, f_pad, bf16)      # resident
    b1_p = pad2(b1, 1, h_pad, f32)           # biases stay f32 (added after f32 accum)
    b2_p = pad2(b2, 1, f_pad, f32)
    dsum_p = pad2(dsum, m_pad, 1, f32)

    # VMEM budget: double-buffered streamed blocks + resident operands/scratch/output.
    vmem_bytes = 2 * (tm * n_pad * 2 + m_pad * tm * 2)           # A / data blocks
    vmem_bytes += 2 * (n_pad * h_pad + h_pad * f_pad) * 2        # XW1, W2
    vmem_bytes += 2 * (h_pad + f_pad) * 4 + 2 * m_pad * LANE * 4  # biases, dsum
    vmem_bytes += 2 * m_pad * f_pad * 4                          # output block
    vmem_bytes += n_pad * f_pad * 2 + m_pad * n_pad * 4          # H1W2 + DA scratch
    cap = _vmem_cap_bytes()
    vmem_limit = int(min(max(2 * vmem_bytes, 16 << 20), cap))

    grid_spec = pltpu.PrefetchScalarGridSpec(
        num_scalar_prefetch=0,
        grid=(nb,),
        in_specs=[
            pl.BlockSpec((tm, n_pad), lambda i: (i, 0)),      # A_hat row block (streamed)
            pl.BlockSpec((m_pad, tm), lambda i: (0, i)),      # data column block (streamed)
            pl.BlockSpec((n_pad, h_pad), lambda i: (0, 0)),   # XW1 (resident)
            pl.BlockSpec((1, h_pad), lambda i: (0, 0)),       # b1
            pl.BlockSpec((h_pad, f_pad), lambda i: (0, 0)),   # W2
            pl.BlockSpec((1, f_pad), lambda i: (0, 0)),       # b2
            pl.BlockSpec((m_pad, 1), lambda i: (0, 0)),       # rowsum(data)
        ],
        out_specs=pl.BlockSpec((m_pad, f_pad), lambda i: (0, 0)),
        scratch_shapes=[
            pltpu.VMEM((n_pad, f_pad), bf16),        # H1 @ W2 (resident)
            pltpu.VMEM((m_pad, n_pad), jnp.float32),  # data @ A accumulator (resident)
        ],
    )

    out = pl.pallas_call(
        gcn_kernel,
        out_shape=jax.ShapeDtypeStruct((m_pad, f_pad), jnp.float32),
        grid_spec=grid_spec,
        compiler_params=pltpu.CompilerParams(
            # Row-block axis carries the DA accumulator and the final write, so it
            # must stay sequential.
            dimension_semantics=("arbitrary",),
            vmem_limit_bytes=vmem_limit,
        ),
    )(a_p, d_p, xw1_p, b1_p, w2_p, b2_p, dsum_p)

    return out[:M, :F_dim]


def build_normalized_adjacency(edge_index, num_nodes):
    """Dense A_hat = D^{-1/2} (A + I) D^{-1/2} from a [2, E] edge_index.

    Uses scatter-add (duplicate edges sum, matching PyG's gcn_norm) and adds
    self loops with weight 1.
    """
    src, dst = edge_index
    a = jnp.zeros((num_nodes, num_nodes), jnp.float32)
    a = a.at[dst, src].add(1.0)                           # aggregate src -> dst
    a = a + jnp.eye(num_nodes, dtype=jnp.float32)         # add self loops
    deg = a.sum(axis=1)
    d_inv_sqrt = jnp.where(deg > 0, 1.0 / jnp.sqrt(deg), 0.0)
    return d_inv_sqrt[:, None] * a * d_inv_sqrt[None, :]


if __name__ == "__main__":
    # --- small deterministic problem (N=200 pads to 256 -> single grid step) ---
    N = 200           # number of graph nodes
    gene_dim = 8
    hidden_dim = 32
    feature_dim = 16
    M = 4             # leading dim of `data`

    key = jax.random.PRNGKey(0)
    k_x, k_d, k_w1, k_b1, k_w2, k_b2 = jax.random.split(key, 6)

    x = jax.random.normal(k_x, (N, gene_dim), jnp.float32)
    data = jax.random.normal(k_d, (M, N), jnp.float32)

    # deterministic ring graph (bidirectional edges), edge_index shape [2, 2N]
    idx = jnp.arange(N)
    src = jnp.concatenate([idx, (idx + 1) % N])
    dst = jnp.concatenate([(idx + 1) % N, idx])
    edge_index = jnp.stack([src, dst])
    a_hat = build_normalized_adjacency(edge_index, N)

    # deterministic parameter init (synthetic weights, not a checkpoint)
    w1 = 0.1 * jax.random.normal(k_w1, (gene_dim, hidden_dim), jnp.float32)
    b1 = 0.1 * jax.random.normal(k_b1, (1, hidden_dim), jnp.float32)
    w2 = 0.1 * jax.random.normal(k_w2, (hidden_dim, feature_dim), jnp.float32)
    b2 = 0.1 * jax.random.normal(k_b2, (1, feature_dim), jnp.float32)

    out = gcn_forward(data, x, a_hat, w1, b1, w2, b2)
    out = jax.block_until_ready(out)
    assert out.shape == (M, feature_dim)

    # --- reference mirroring the kernel's bf16 operands / f32 accumulation / fusion ---
    def bf(v):
        return v.astype(jnp.bfloat16)

    xw1_r = jnp.dot(bf(x), bf(w1),
                    preferred_element_type=jnp.float32).astype(jnp.bfloat16)
    h1_r = jnp.maximum(
        jnp.dot(bf(a_hat), xw1_r, preferred_element_type=jnp.float32) + b1, 0.0)
    h1w2_r = jnp.dot(bf(h1_r), bf(w2),
                     preferred_element_type=jnp.float32).astype(jnp.bfloat16)
    da_r = jnp.dot(bf(data), bf(a_hat), preferred_element_type=jnp.float32)
    ref_bf = (jnp.dot(bf(da_r), h1w2_r, preferred_element_type=jnp.float32)
              + data.sum(axis=1, keepdims=True) * b2)
    assert jnp.allclose(out, ref_bf, atol=1e-2, rtol=1e-2)

    # --- loose sanity check against the pure-f32 module forward (original algebra) ---
    h1_f = jnp.maximum(a_hat @ (x @ w1) + b1, 0.0)
    h2_f = a_hat @ (h1_f @ w2) + b2
    ref_f32 = data @ h2_f
    assert jnp.allclose(out, ref_f32, atol=0.5, rtol=0.2)

    print("KERNEL_OK")
</pallas_src>

<mosaic_0001>
module attributes {stable_mosaic.version = 11 : i64} {
  func.func @gcn_kernel(%arg0: i32, %arg1: memref<256x256xbf16, #tpu.memory_space<vmem>>, %arg2: memref<8x256xbf16, #tpu.memory_space<vmem>>, %arg3: memref<256x128xbf16, #tpu.memory_space<vmem>>, %arg4: memref<1x128xf32, #tpu.memory_space<vmem>>, %arg5: memref<128x128xbf16, #tpu.memory_space<vmem>>, %arg6: memref<1x128xf32, #tpu.memory_space<vmem>>, %arg7: memref<8x1xf32, #tpu.memory_space<vmem>>, %arg8: memref<8x128xf32, #tpu.memory_space<vmem>>, %arg9: memref<256x128xbf16, #tpu.memory_space<vmem>>, %arg10: memref<8x256xf32, #tpu.memory_space<vmem>>) attributes {dimension_semantics = [#tpu.dimension_semantics<arbitrary>], iteration_bounds = array<i64: 1>, scalar_prefetch = 0 : i64, scratch_operands = 2 : i64, tpu.core_type = #tpu.core_type<tc>, window_params = [{transform_indices = @transform_0, window_bounds = array<i64: 256, 256>}, {transform_indices = @transform_1, window_bounds = array<i64: 8, 256>}, {pipeline_mode = #tpu.pipeline_mode<synchronous>, transform_indices = @transform_2, window_bounds = array<i64: 256, 128>}, {pipeline_mode = #tpu.pipeline_mode<synchronous>, transform_indices = @transform_3, window_bounds = array<i64: 1, 128>}, {pipeline_mode = #tpu.pipeline_mode<synchronous>, transform_indices = @transform_4, window_bounds = array<i64: 128, 128>}, {pipeline_mode = #tpu.pipeline_mode<synchronous>, transform_indices = @transform_5, window_bounds = array<i64: 1, 128>}, {pipeline_mode = #tpu.pipeline_mode<synchronous>, transform_indices = @transform_6, window_bounds = array<i64: 8, 1>}, {pipeline_mode = #tpu.pipeline_mode<synchronous>, transform_indices = @transform_7, window_bounds = array<i64: 8, 128>}]} {
    %c0_i32 = arith.constant 0 : i32
    %0 = arith.cmpi eq, %arg0, %c0_i32 : i32
    %1 = arith.extui %0 : i1 to i32
    %c0_i32_0 = arith.constant 0 : i32
    %2 = arith.cmpi ne, %1, %c0_i32_0 : i32
    scf.if %2 {
      %cst_22 = arith.constant 0.000000e+00 : f32
      %28 = vector.broadcast %cst_22 : f32 to vector<8x256xf32>
      %c0_23 = arith.constant 0 : index
      %c0_24 = arith.constant 0 : index
      %29 = vector.load %arg10[%c0_23, %c0_24] : memref<8x256xf32, #tpu.memory_space<vmem>>, vector<8x256xf32>
      tpu.vector_store %arg10[%c0_23, %c0_24], %28 {strides = array<i32>} : memref<8x256xf32, #tpu.memory_space<vmem>>, vector<8x256xf32>,
    } else {
    }
    %c0 = arith.constant 0 : index
    %c0_1 = arith.constant 0 : index
    %3 = vector.load %arg1[%c0, %c0_1] : memref<256x256xbf16, #tpu.memory_space<vmem>>, vector<256x256xbf16>
    %c0_2 = arith.constant 0 : index
    %c0_3 = arith.constant 0 : index
    %4 = vector.load %arg3[%c0_2, %c0_3] : memref<256x128xbf16, #tpu.memory_space<vmem>>, vector<256x128xbf16>
    %cst = arith.constant dense<0.000000e+00> : vector<256x128xf32>
    %5 = tpu.matmul %3, %4, %cst {dimension_numbers = #tpu.dot_dimension_numbers<[1], [0], [0], [1], [0, 0, 1, 1], [], []>} : vector<256x256xbf16>, vector<256x128xbf16>, vector<256x128xf32> -> vector<256x128xf32>
    %c0_4 = arith.constant 0 : index
    %c0_5 = arith.constant 0 : index
    %6 = vector.load %arg4[%c0_4, %c0_5] : memref<1x128xf32, #tpu.memory_space<vmem>>, vector<1x128xf32>
    %7 = vector.broadcast %6 : vector<1x128xf32> to vector<256x128xf32>
    %8 = arith.addf %5, %7 : vector<256x128xf32>
    %cst_6 = arith.constant 0.000000e+00 : f32
    %9 = vector.broadcast %cst_6 : f32 to vector<256x128xf32>
    %10 = arith.maximumf %8, %9 : vector<256x128xf32>
    %11 = arith.truncf %10 : vector<256x128xf32> to vector<256x128xbf16>
    %c0_7 = arith.constant 0 : index
    %c0_8 = arith.constant 0 : index
    %12 = vector.load %arg5[%c0_7, %c0_8] : memref<128x128xbf16, #tpu.memory_space<vmem>>, vector<128x128xbf16>
    %cst_9 = arith.constant dense<0.000000e+00> : vector<256x128xf32>
    %13 = tpu.matmul %11, %12, %cst_9 {dimension_numbers = #tpu.dot_dimension_numbers<[1], [0], [0], [1], [0, 0, 1, 1], [], []>} : vector<256x128xbf16>, vector<128x128xbf16>, vector<256x128xf32> -> vector<256x128xf32>
    %c256_i32 = arith.constant 256 : i32
    %14 = arith.muli %arg0, %c256_i32 : i32
    %15 = tpu.assume_multiple %14, 256 : i32
    %16 = arith.truncf %13 : vector<256x128xf32> to vector<256x128xbf16>
    %17 = arith.index_cast %15 : i32 to index
    %c0_10 = arith.constant 0 : index
    %18 = vector.load %arg9[%17, %c0_10] : memref<256x128xbf16, #tpu.memory_space<vmem>>, vector<256x128xbf16>
    tpu.vector_store %arg9[%17, %c0_10], %16 {strides = array<i32>} : memref<256x128xbf16, #tpu.memory_space<vmem>>, vector<256x128xbf16>,
    %c0_11 = arith.constant 0 : index
    %c0_12 = arith.constant 0 : index
    %19 = vector.load %arg10[%c0_11, %c0_12] : memref<8x256xf32, #tpu.memory_space<vmem>>, vector<8x256xf32>
    %c0_13 = arith.constant 0 : index
    %c0_14 = arith.constant 0 : index
    %20 = vector.load %arg2[%c0_13, %c0_14] : memref<8x256xbf16, #tpu.memory_space<vmem>>, vector<8x256xbf16>
    %c0_15 = arith.constant 0 : index
    %c0_16 = arith.constant 0 : index
    %21 = vector.load %arg1[%c0_15, %c0_16] : memref<256x256xbf16, #tpu.memory_space<vmem>>, vector<256x256xbf16>
    %cst_17 = arith.constant dense<0.000000e+00> : vector<8x256xf32>
    %22 = tpu.matmul %20, %21, %cst_17 {dimension_numbers = #tpu.dot_dimension_numbers<[1], [0], [0], [1], [0, 0, 1, 1], [], []>} : vector<8x256xbf16>, vector<256x256xbf16>, vector<8x256xf32> -> vector<8x256xf32>
    %23 = arith.addf %19, %22 : vector<8x256xf32>
    %c0_18 = arith.constant 0 : index
    %c0_19 = arith.constant 0 : index
    %24 = vector.load %arg10[%c0_18, %c0_19] : memref<8x256xf32, #tpu.memory_space<vmem>>, vector<8x256xf32>
    tpu.vector_store %arg10[%c0_18, %c0_19], %23 {strides = array<i32>} : memref<8x256xf32, #tpu.memory_space<vmem>>, vector<8x256xf32>,
    %c0_i32_20 = arith.constant 0 : i32
    %25 = arith.cmpi eq, %arg0, %c0_i32_20 : i32
    %26 = arith.extui %25 : i1 to i32
    %c0_i32_21 = arith.constant 0 : i32
    %27 = arith.cmpi ne, %26, %c0_i32_21 : i32
    scf.if %27 {
      %c0_22 = arith.constant 0 : index
      %c0_23 = arith.constant 0 : index
      %28 = vector.load %arg10[%c0_22, %c0_23] : memref<8x256xf32, #tpu.memory_space<vmem>>, vector<8x256xf32>
      %29 = arith.truncf %28 : vector<8x256xf32> to vector<8x256xbf16>
      %c0_24 = arith.constant 0 : index
      %c0_25 = arith.constant 0 : index
      %30 = vector.load %arg9[%c0_24, %c0_25] : memref<256x128xbf16, #tpu.memory_space<vmem>>, vector<256x128xbf16>
      %cst_26 = arith.constant dense<0.000000e+00> : vector<8x128xf32>
      %31 = tpu.matmul %29, %30, %cst_26 {dimension_numbers = #tpu.dot_dimension_numbers<[1], [0], [0], [1], [0, 0, 1, 1], [], []>} : vector<8x256xbf16>, vector<256x128xbf16>, vector<8x128xf32> -> vector<8x128xf32>
      %c0_27 = arith.constant 0 : index
      %c0_28 = arith.constant 0 : index
      %32 = vector.load %arg7[%c0_27, %c0_28] : memref<8x1xf32, #tpu.memory_space<vmem>>, vector<8x1xf32>
      %c0_29 = arith.constant 0 : index
      %c0_30 = arith.constant 0 : index
      %33 = vector.load %arg6[%c0_29, %c0_30] : memref<1x128xf32, #tpu.memory_space<vmem>>, vector<1x128xf32>
      %34 = vector.broadcast %32 : vector<8x1xf32> to vector<8x128xf32>
      %35 = vector.broadcast %33 : vector<1x128xf32> to vector<8x128xf32>
      %36 = arith.mulf %34, %35 : vector<8x128xf32>
      %37 = arith.addf %31, %36 : vector<8x128xf32>
      %c0_31 = arith.constant 0 : index
      %c0_32 = arith.constant 0 : index
      %38 = vector.load %arg8[%c0_31, %c0_32] : memref<8x128xf32, #tpu.memory_space<vmem>>, vector<8x128xf32>
      tpu.vector_store %arg8[%c0_31, %c0_32], %37 {strides = array<i32>} : memref<8x128xf32, #tpu.memory_space<vmem>>, vector<8x128xf32>,
    } else {
    }
    return
  }
  func.func @transform_0(%arg0: i32) -> (i32, i32) {
    %c0_i32 = arith.constant 0 : i32
    %c0_i32_0 = arith.constant 0 : i32
    return %arg0, %c0_i32 : i32, i32
  }
  func.func @transform_1(%arg0: i32) -> (i32, i32) {
    %c0_i32 = arith.constant 0 : i32
    %c0_i32_0 = arith.constant 0 : i32
    return %c0_i32, %arg0 : i32, i32
  }
  func.func @transform_2(%arg0: i32) -> (i32, i32) {
    %c0_i32 = arith.constant 0 : i32
    %c0_i32_0 = arith.constant 0 : i32
    %c0_i32_1 = arith.constant 0 : i32
    return %c0_i32, %c0_i32_0 : i32, i32
  }
  func.func @transform_3(%arg0: i32) -> (i32, i32) {
    %c0_i32 = arith.constant 0 : i32
    %c0_i32_0 = arith.constant 0 : i32
    %c0_i32_1 = arith.constant 0 : i32
    return %c0_i32, %c0_i32_0 : i32, i32
  }
  func.func @transform_4(%arg0: i32) -> (i32, i32) {
    %c0_i32 = arith.constant 0 : i32
    %c0_i32_0 = arith.constant 0 : i32
    %c0_i32_1 = arith.constant 0 : i32
    return %c0_i32, %c0_i32_0 : i32, i32
  }
  func.func @transform_5(%arg0: i32) -> (i32, i32) {
    %c0_i32 = arith.constant 0 : i32
    %c0_i32_0 = arith.constant 0 : i32
    %c0_i32_1 = arith.constant 0 : i32
    return %c0_i32, %c0_i32_0 : i32, i32
  }
  func.func @transform_6(%arg0: i32) -> (i32, i32) {
    %c0_i32 = arith.constant 0 : i32
    %c0_i32_0 = arith.constant 0 : i32
    %c0_i32_1 = arith.constant 0 : i32
    return %c0_i32, %c0_i32_0 : i32, i32
  }
  func.func @transform_7(%arg0: i32) -> (i32, i32) {
    %c0_i32 = arith.constant 0 : i32
    %c0_i32_0 = arith.constant 0 : i32
    %c0_i32_1 = arith.constant 0 : i32
    return %c0_i32, %c0_i32_0 : i32, i32
  }
}

</mosaic_0001>

<llo_original>
// kernel: tpu_custom_call.1
$region0: #{tpu_custom_call.1}
  #allocation0 [shape = 'u32[]', space=smem, size = 0x4, offset = 0x4, fixed_abs, tag = 'smem constant byte address 0x4 - core index']
  #allocation1 [shape = 'u32[72,128]{1,0:T(1,128)}', space=vmem, size = 0x9000, scoped, tag = 'internal scratch']
  #allocation2 [shape = 'bf16[256,128]{1,0:T(8,128)(2,1)}', space=vmem, size = 0x10000, scoped, tag = 'scratch operand']
  #allocation3 [shape = 'f32[8,256]{1,0:T(8,128)}', space=vmem, size = 0x2000, scoped, tag = 'scratch operand']
  %s0 = inlined_call_operand.hbm [shape: bf16[256,256], index: 0, kind: input, shape index: {}]
  %s1 = inlined_call_operand.vmem [shape: bf16[8,256], index: 1, kind: input, shape index: {}]
  %s2 = inlined_call_operand.hbm [shape: bf16[256,128], index: 2, kind: input, shape index: {}]
  %s3 = inlined_call_operand.vmem [shape: f32[1,128], index: 3, kind: input, shape index: {}]
  %s4 = inlined_call_operand.hbm [shape: bf16[128,128], index: 4, kind: input, shape index: {}]
  %s5 = inlined_call_operand.vmem [shape: f32[1,128], index: 5, kind: input, shape index: {}]
  %s6 = inlined_call_operand.vmem [shape: f32[8,1], index: 6, kind: input, shape index: {}]
  %s7 = inlined_call_operand.hbm [shape: f32[8,128], index: 7, kind: output, shape index: {}]
  %s8 = sld [smem:[#allocation0]]
  $region58: #{tpu_custom_call.1} parent=0
    _
  %s10 = ssub.s32 1, %s8
  %s11 = scalar_select 0, %s10, %s8
  $region1: #{tpu_custom_call.1} parent=0
    #allocation4 [shape = 'u8[131072]{0}', space=vmem, size = 0x20000, scoped, tag = 'input window, operand 0, single buffered']
    #allocation5 [shape = 's32[1]{0}', space=sflag, size = 0x4, scoped, tag = 'scoped memory for tpu_custom_call.1']
    #allocation6 [shape = 's32[1]{0}', space=sflag, size = 0x4, scoped, tag = 'scoped memory for tpu_custom_call.1']
    #allocation7 [shape = 'u8[65536]{0}', space=vmem, size = 0x10000, scoped, tag = 'input window, operand 2, single buffered']
    #allocation8 [shape = 's32[1]{0}', space=sflag, size = 0x4, scoped, tag = 'scoped memory for tpu_custom_call.1']
    #allocation9 [shape = 'u8[32768]{0}', space=vmem, size = 0x8000, scoped, tag = 'input window, operand 4, single buffered']
    #allocation10 [shape = 'u8[4096]{0}', space=vmem, size = 0x1000, scoped, tag = 'output window, operand 0, single buffered']
    %12 = vsyncpa [#allocation5], 0
    %13 = vsyncpa [#allocation8], 0
    %14 = vsyncpa [#allocation6], 0
    // Predicated region
    $region2: #{tpu_custom_call.1} parent=1 // pred_check
      _
    $region3: #{tpu_custom_call.1} parent=1 // pred_check_branch
      %16 = sbr.rel (0) target = $region5
    $region4: #{tpu_custom_call.1} parent=1 // pred_region
      %18 = vsyncadd [#allocation5], 0
      %s19 = sshll.u32 %s0, 4
      %s20 = int_to_ptr.hbm [resolvable:$true] %s19
      %s21 = sshll.u32 [#allocation4], 4
      %s22 = int_to_ptr.vmem [resolvable:$true] %s21
      %27 = dma.hbm_to_vmem [thread:$0]  %s20, 4096, %s22, [#allocation5], 128, 128, 8
    $region5: #{tpu_custom_call.1} parent=1 // pred_fallthru
      _
    // Predicated region
    $region6: #{tpu_custom_call.1} parent=1 // pred_check
      _
    $region7: #{tpu_custom_call.1} parent=1 // pred_check_branch
      %29 = sbr.rel (0) target = $region9
    $region8: #{tpu_custom_call.1} parent=1 // pred_region
      _
    $region9: #{tpu_custom_call.1} parent=1 // pred_fallthru
      _
    // Predicated region
    $region10: #{tpu_custom_call.1} parent=1 // pred_check
      _
    $region11: #{tpu_custom_call.1} parent=1 // pred_check_branch
      %31 = sbr.rel (0) target = $region13
    $region12: #{tpu_custom_call.1} parent=1 // pred_region
      %33 = vsyncadd [#allocation8], 0
      %s34 = sshll.u32 %s2, 4
      %s35 = int_to_ptr.hbm [resolvable:$true] %s34
      %s36 = sshll.u32 [#allocation7], 4
      %s37 = int_to_ptr.vmem [resolvable:$true] %s36
      %42 = dma.hbm_to_vmem [thread:$0]  %s35, 2048, %s37, [#allocation8], 64, 64, 4
    $region13: #{tpu_custom_call.1} parent=1 // pred_fallthru
      _
    // Predicated region
    $region14: #{tpu_custom_call.1} parent=1 // pred_check
      _
    $region15: #{tpu_custom_call.1} parent=1 // pred_check_branch
      %44 = sbr.rel (0) target = $region17
    $region16: #{tpu_custom_call.1} parent=1 // pred_region
      _
    $region17: #{tpu_custom_call.1} parent=1 // pred_fallthru
      _
    // Predicated region
    $region18: #{tpu_custom_call.1} parent=1 // pred_check
      _
    $region19: #{tpu_custom_call.1} parent=1 // pred_check_branch
      %46 = sbr.rel (0) target = $region21
    $region20: #{tpu_custom_call.1} parent=1 // pred_region
      %48 = vsyncadd [#allocation8], 0
      %s49 = sshll.u32 %s4, 4
      %s50 = int_to_ptr.hbm [resolvable:$true] %s49
      %s51 = sshll.u32 [#allocation9], 4
      %s52 = int_to_ptr.vmem [resolvable:$true] %s51
      %57 = dma.hbm_to_vmem [thread:$0]  %s50, 1024, %s52, [#allocation8], 64, 64, 4
    $region21: #{tpu_custom_call.1} parent=1 // pred_fallthru
      _
    // Predicated region
    $region22: #{tpu_custom_call.1} parent=1 // pred_check
      _
    $region23: #{tpu_custom_call.1} parent=1 // pred_check_branch
      %59 = sbr.rel (0) target = $region25
    $region24: #{tpu_custom_call.1} parent=1 // pred_region
      _
    $region25: #{tpu_custom_call.1} parent=1 // pred_fallthru
      _
    // Predicated region
    $region26: #{tpu_custom_call.1} parent=1 // pred_check
      _
    $region27: #{tpu_custom_call.1} parent=1 // pred_check_branch
      %61 = sbr.rel (0) target = $region29
    $region28: #{tpu_custom_call.1} parent=1 // pred_region
      _
    $region29: #{tpu_custom_call.1} parent=1 // pred_fallthru
      _
    // Predicated region
    $region30: #{tpu_custom_call.1} parent=1 // pred_check
      _
    $region31: #{tpu_custom_call.1} parent=1 // pred_check_branch
      %63 = sbr.rel (0) target = $region33
    $region32: #{tpu_custom_call.1} parent=1 // pred_region
      %65 = dma.done [#allocation5], 4096
    $region33: #{tpu_custom_call.1} parent=1 // pred_fallthru
      _
    // Predicated region
    $region34: #{tpu_custom_call.1} parent=1 // pred_check
      _
    $region35: #{tpu_custom_call.1} parent=1 // pred_check_branch
      %67 = sbr.rel (0) target = $region37
    $region36: #{tpu_custom_call.1} parent=1 // pred_region
      %69 = dma.done [#allocation8], 2048
    $region37: #{tpu_custom_call.1} parent=1 // pred_fallthru
      _
    // Predicated region
    $region38: #{tpu_custom_call.1} parent=1 // pred_check
      _
    $region39: #{tpu_custom_call.1} parent=1 // pred_check_branch
      %71 = sbr.rel (0) target = $region41
    $region40: #{tpu_custom_call.1} parent=1 // pred_region
      %73 = dma.done [#allocation8], 1024
    $region41: #{tpu_custom_call.1} parent=1 // pred_fallthru
      _
    %p74 = scmp.eq.s32.totalorder 0, 0
    // Predicated region
    $region42: #{tpu_custom_call.1} parent=1 // pred_check
      %p75 = pneg %p74
    $region43: #{tpu_custom_call.1} parent=1 // pred_check_branch
      %77 = sbr.rel (%p75) target = $region45
    $region44: #{tpu_custom_call.1} parent=1 // pred_region
      %78 = vst [vmem:[#allocation3] sm:$0xff] 0.0
      %79 = vst [vmem:[#allocation3 + $0x8] sm:$0xff] 0.0
    $region45: #{tpu_custom_call.1} parent=1 // pred_fallthru
      _
    %v80 = vld [vmem:[#allocation4] sm:$0xff]
    %v81 = vld [vmem:[#allocation4 + $0x8] sm:$0xff]
    %v82 = vld [vmem:[#allocation4 + $0x10] sm:$0xff]
    %v83 = vld [vmem:[#allocation4 + $0x18] sm:$0xff]
    %v84 = vld [vmem:[#allocation4 + $0x20] sm:$0xff]
    %v85 = vld [vmem:[#allocation4 + $0x28] sm:$0xff]
    %v86 = vld [vmem:[#allocation4 + $0x30] sm:$0xff]
    %v87 = vld [vmem:[#allocation4 + $0x38] sm:$0xff]
    %v88 = vld [vmem:[#allocation4 + $0x40] sm:$0xff]
    %v89 = vld [vmem:[#allocation4 + $0x48] sm:$0xff]
    %v90 = vld [vmem:[#allocation4 + $0x50] sm:$0xff]
    %v91 = vld [vmem:[#allocation4 + $0x58] sm:$0xff]
    %v92 = vld [vmem:[#allocation4 + $0x60] sm:$0xff]
    %v93 = vld [vmem:[#allocation4 + $0x68] sm:$0xff]
    %v94 = vld [vmem:[#allocation4 + $0x70] sm:$0xff]
    %v95 = vld [vmem:[#allocation4 + $0x78] sm:$0xff]
    %v96 = vld [vmem:[#allocation4 + $0x80] sm:$0xff]
    %v97 = vld [vmem:[#allocation4 + $0x88] sm:$0xff]
    %v98 = vld [vmem:[#allocation4 + $0x90] sm:$0xff]
    %v99 = vld [vmem:[#allocation4 + $0x98] sm:$0xff]
    %v100 = vld [vmem:[#allocation4 + $0xa0] sm:$0xff]
    %v101 = vld [vmem:[#allocation4 + $0xa8] sm:$0xff]
    %v102 = vld [vmem:[#allocation4 + $0xb0] sm:$0xff]
    %v103 = vld [vmem:[#allocation4 + $0xb8] sm:$0xff]
    %v104 = vld [vmem:[#allocation4 + $0xc0] sm:$0xff]
    %v105 = vld [vmem:[#allocation4 + $0xc8] sm:$0xff]
    %v106 = vld [vmem:[#allocation4 + $0xd0] sm:$0xff]
    %v107 = vld [vmem:[#allocation4 + $0xd8] sm:$0xff]
    %v108 = vld [vmem:[#allocation4 + $0xe0] sm:$0xff]
    %v109 = vld [vmem:[#allocation4 + $0xe8] sm:$0xff]
    %v110 = vld [vmem:[#allocation4 + $0xf0] sm:$0xff]
    %v111 = vld [vmem:[#allocation4 + $0xf8] sm:$0xff]
    %v112 = vld [vmem:[#allocation7] sm:$0xf]
    %v113 = vld [vmem:[#allocation7 + $0x4] sm:$0xf]
    %v114 = vld [vmem:[#allocation7 + $0x8] sm:$0xf]
    %v115 = vld [vmem:[#allocation7 + $0xc] sm:$0xf]
    %v116 = vld [vmem:[#allocation7 + $0x10] sm:$0xf]
    %v117 = vld [vmem:[#allocation7 + $0x14] sm:$0xf]
    %v118 = vld [vmem:[#allocation7 + $0x18] sm:$0xf]
    %v119 = vld [vmem:[#allocation7 + $0x1c] sm:$0xf]
    %v120 = vld [vmem:[#allocation7 + $0x20] sm:$0xf]
    %v121 = vld [vmem:[#allocation7 + $0x24] sm:$0xf]
    %v122 = vld [vmem:[#allocation7 + $0x28] sm:$0xf]
    %v123 = vld [vmem:[#allocation7 + $0x2c] sm:$0xf]
    %v124 = vld [vmem:[#allocation7 + $0x30] sm:$0xf]
    %v125 = vld [vmem:[#allocation7 + $0x34] sm:$0xf]
    %v126 = vld [vmem:[#allocation7 + $0x38] sm:$0xf]
    %v127 = vld [vmem:[#allocation7 + $0x3c] sm:$0xf]
    %v128 = vld [vmem:[#allocation7 + $0x40] sm:$0xf]
    %v129 = vld [vmem:[#allocation7 + $0x44] sm:$0xf]
    %v130 = vld [vmem:[#allocation7 + $0x48] sm:$0xf]
    %v131 = vld [vmem:[#allocation7 + $0x4c] sm:$0xf]
    %v132 = vld [vmem:[#allocation7 + $0x50] sm:$0xf]
    %v133 = vld [vmem:[#allocation7 + $0x54] sm:$0xf]
    %v134 = vld [vmem:[#allocation7 + $0x58] sm:$0xf]
    %v135 = vld [vmem:[#allocation7 + $0x5c] sm:$0xf]
    %v136 = vld [vmem:[#allocation7 + $0x60] sm:$0xf]
    %v137 = vld [vmem:[#allocation7 + $0x64] sm:$0xf]
    %v138 = vld [vmem:[#allocation7 + $0x68] sm:$0xf]
    %v139 = vld [vmem:[#allocation7 + $0x6c] sm:$0xf]
    %v140 = vld [vmem:[#allocation7 + $0x70] sm:$0xf]
    %v141 = vld [vmem:[#allocation7 + $0x74] sm:$0xf]
    %v142 = vld [vmem:[#allocation7 + $0x78] sm:$0xf]
    %v143 = vld [vmem:[#allocation7 + $0x7c] sm:$0xf]
    %v144 = vld [vmem:[%s3] sm:$0x1]
    %v146 = vperm.slane %v144, 0
    %v180 = vunpack.c.l.b16 %v80
    %v181 = vunpack.c.h.b16 %v80
    %v182 = vunpack.c.l.b16 %v81
    %v183 = vunpack.c.h.b16 %v81
    %v184 = vunpack.c.l.b16 %v82
    %v185 = vunpack.c.h.b16 %v82
    %v186 = vunpack.c.l.b16 %v83
    %v187 = vunpack.c.h.b16 %v83
    %v188 = vunpack.c.l.b16 %v84
    %v189 = vunpack.c.h.b16 %v84
    %v190 = vunpack.c.l.b16 %v85
    %v191 = vunpack.c.h.b16 %v85
    %v192 = vunpack.c.l.b16 %v86
    %v193 = vunpack.c.h.b16 %v86
    %v194 = vunpack.c.l.b16 %v87
    %v195 = vunpack.c.h.b16 %v87
    %v196 = vunpack.c.l.b16 %v88
    %v197 = vunpack.c.h.b16 %v88
    %v198 = vunpack.c.l.b16 %v89
    %v199 = vunpack.c.h.b16 %v89
    %v200 = vunpack.c.l.b16 %v90
    %v201 = vunpack.c.h.b16 %v90
    %v202 = vunpack.c.l.b16 %v91
    %v203 = vunpack.c.h.b16 %v91
    %v204 = vunpack.c.l.b16 %v92
    %v205 = vunpack.c.h.b16 %v92
    %v206 = vunpack.c.l.b16 %v93
    %v207 = vunpack.c.h.b16 %v93
    %v208 = vunpack.c.l.b16 %v94
    %v209 = vunpack.c.h.b16 %v94
    %v210 = vunpack.c.l.b16 %v95
    %v211 = vunpack.c.h.b16 %v95
    %v212 = vunpack.c.l.b16 %v96
    %v213 = vunpack.c.h.b16 %v96
    %v214 = vunpack.c.l.b16 %v97
    %v215 = vunpack.c.h.b16 %v97
    %v216 = vunpack.c.l.b16 %v98
    %v217 = vunpack.c.h.b16 %v98
    %v218 = vunpack.c.l.b16 %v99
    %v219 = vunpack.c.h.b16 %v99
    %v220 = vunpack.c.l.b16 %v100
    %v221 = vunpack.c.h.b16 %v100
    %v222 = vunpack.c.l.b16 %v101
    %v223 = vunpack.c.h.b16 %v101
    %v224 = vunpack.c.l.b16 %v102
    %v225 = vunpack.c.h.b16 %v102
    %v226 = vunpack.c.l.b16 %v103
    %v227 = vunpack.c.h.b16 %v103
    %v228 = vunpack.c.l.b16 %v104
    %v229 = vunpack.c.h.b16 %v104
    %v230 = vunpack.c.l.b16 %v105
    %v231 = vunpack.c.h.b16 %v105
    %v232 = vunpack.c.l.b16 %v106
    %v233 = vunpack.c.h.b16 %v106
    %v234 = vunpack.c.l.b16 %v107
    %v235 = vunpack.c.h.b16 %v107
    %v236 = vunpack.c.l.b16 %v108
    %v237 = vunpack.c.h.b16 %v108
    %v238 = vunpack.c.l.b16 %v109
    %v239 = vunpack.c.h.b16 %v109
    %v240 = vunpack.c.l.b16 %v110
    %v241 = vunpack.c.h.b16 %v110
    %v242 = vunpack.c.l.b16 %v111
    %v243 = vunpack.c.h.b16 %v111
    %v244 = vpack.c.b16 %v182, %v180
    %v245 = vpack.c.b16 %v183, %v181
    %v246 = vpack.c.b16 %v186, %v184
    %v247 = vpack.c.b16 %v187, %v185
    %v248 = vpack.c.b16 %v190, %v188
    %v249 = vpack.c.b16 %v191, %v189
    %v250 = vpack.c.b16 %v194, %v192
    %v251 = vpack.c.b16 %v195, %v193
    %v252 = vpack.c.b16 %v198, %v196
    %v253 = vpack.c.b16 %v199, %v197
    %v254 = vpack.c.b16 %v202, %v200
    %v255 = vpack.c.b16 %v203, %v201
    %v256 = vpack.c.b16 %v206, %v204
    %v257 = vpack.c.b16 %v207, %v205
    %v258 = vpack.c.b16 %v210, %v208
    %v259 = vpack.c.b16 %v211, %v209
    %v260 = vpack.c.b16 %v214, %v212
    %v261 = vpack.c.b16 %v215, %v213
    %v262 = vpack.c.b16 %v218, %v216
    %v263 = vpack.c.b16 %v219, %v217
    %v264 = vpack.c.b16 %v222, %v220
    %v265 = vpack.c.b16 %v223, %v221
    %v266 = vpack.c.b16 %v226, %v224
    %v267 = vpack.c.b16 %v227, %v225
    %v268 = vpack.c.b16 %v230, %v228
    %v269 = vpack.c.b16 %v231, %v229
    %v270 = vpack.c.b16 %v234, %v232
    %v271 = vpack.c.b16 %v235, %v233
    %v272 = vpack.c.b16 %v238, %v236
    %v273 = vpack.c.b16 %v239, %v237
    %v274 = vpack.c.b16 %v242, %v240
    %v275 = vpack.c.b16 %v243, %v241
    %v340 = vunpack.c.l.b16 %v112
    %v341 = vunpack.c.l.b16 %v113
    %v342 = vunpack.c.l.b16 %v114
    %v343 = vunpack.c.l.b16 %v115
    %v344 = vunpack.c.l.b16 %v116
    %v345 = vunpack.c.l.b16 %v117
    %v346 = vunpack.c.l.b16 %v118
    %v347 = vunpack.c.l.b16 %v119
    %v348 = vunpack.c.l.b16 %v120
    %v349 = vunpack.c.l.b16 %v121
    %v350 = vunpack.c.l.b16 %v122
    %v351 = vunpack.c.l.b16 %v123
    %v352 = vunpack.c.l.b16 %v124
    %v353 = vunpack.c.l.b16 %v125
    %v354 = vunpack.c.l.b16 %v126
    %v355 = vunpack.c.l.b16 %v127
    %v356 = vunpack.c.l.b16 %v128
    %v357 = vunpack.c.l.b16 %v129
    %v358 = vunpack.c.l.b16 %v130
    %v359 = vunpack.c.l.b16 %v131
    %v360 = vunpack.c.l.b16 %v132
    %v361 = vunpack.c.l.b16 %v133
    %v362 = vunpack.c.l.b16 %v134
    %v363 = vunpack.c.l.b16 %v135
    %v364 = vunpack.c.l.b16 %v136
    %v365 = vunpack.c.l.b16 %v137
    %v366 = vunpack.c.l.b16 %v138
    %v367 = vunpack.c.l.b16 %v139
    %v368 = vunpack.c.l.b16 %v140
    %v369 = vunpack.c.l.b16 %v141
    %v370 = vunpack.c.l.b16 %v142
    %v371 = vunpack.c.l.b16 %v143
    %v372 = vpack.c.b16 %v341, %v340
    %v373 = vpack.c.b16 %v343, %v342
    %v374 = vpack.c.b16 %v345, %v344
    %v375 = vpack.c.b16 %v347, %v346
    %v376 = vpack.c.b16 %v349, %v348
    %v377 = vpack.c.b16 %v351, %v350
    %v378 = vpack.c.b16 %v353, %v352
    %v379 = vpack.c.b16 %v355, %v354
    %v380 = vpack.c.b16 %v357, %v356
    %v381 = vpack.c.b16 %v359, %v358
    %v382 = vpack.c.b16 %v361, %v360
    %v383 = vpack.c.b16 %v363, %v362
    %v384 = vpack.c.b16 %v365, %v364
    %v385 = vpack.c.b16 %v367, %v366
    %v386 = vpack.c.b16 %v369, %v368
    %v387 = vpack.c.b16 %v371, %v370
    %404 = vmatpush.bf16.msra.mxu0 %v379
    %405 = vmatpush.bf16.msra.mxu0 %v378
    %406 = vmatpush.bf16.msra.mxu0 %v377
    %407 = vmatpush.bf16.msra.mxu0 %v376
    %408 = vmatpush.bf16.msra.mxu0 %v375
    %409 = vmatpush.bf16.msra.mxu0 %v374
    %410 = vmatpush.bf16.msra.mxu0 %v373
    %411 = vmatpush.bf16.msra.mxu0 %v372
    %412 = vmatmul.bf16.gmra.mxu0 %v244
    %v413 = vpop.f32.mrf.mxu0
    %v414 = vadd.f32 %v146, %v413
    %v415 = vpop.f32.mrf.mxu0
    %v416 = vadd.f32 %v146, %v415
    %417 = vmatmul.bf16.gmra.mxu0 %v246
    %v418 = vpop.f32.mrf.mxu0
    %v419 = vadd.f32 %v146, %v418
    %v420 = vpop.f32.mrf.mxu0
    %v421 = vadd.f32 %v146, %v420
    %422 = vmatmul.bf16.gmra.mxu0 %v248
    %v423 = vpop.f32.mrf.mxu0
    %v424 = vadd.f32 %v146, %v423
    %v425 = vpop.f32.mrf.mxu0
    %v426 = vadd.f32 %v146, %v425
    %427 = vmatmul.bf16.gmra.mxu0 %v250
    %v428 = vpop.f32.mrf.mxu0
    %v429 = vadd.f32 %v146, %v428
    %v430 = vpop.f32.mrf.mxu0
    %v431 = vadd.f32 %v146, %v430
    %432 = vmatmul.bf16.gmra.mxu0 %v252
    %v433 = vpop.f32.mrf.mxu0
    %v434 = vadd.f32 %v146, %v433
    %v435 = vpop.f32.mrf.mxu0
    %v436 = vadd.f32 %v146, %v435
    %437 = vmatmul.bf16.gmra.mxu0 %v254
    %v438 = vpop.f32.mrf.mxu0
    %v439 = vadd.f32 %v146, %v438
    %v440 = vpop.f32.mrf.mxu0
    %v441 = vadd.f32 %v146, %v440
    %442 = vmatmul.bf16.gmra.mxu0 %v256
    %v443 = vpop.f32.mrf.mxu0
    %v444 = vadd.f32 %v146, %v443
    %v445 = vpop.f32.mrf.mxu0
    %v446 = vadd.f32 %v146, %v445
    %447 = vmatmul.bf16.gmra.mxu0 %v258
    %v448 = vpop.f32.mrf.mxu0
    %v449 = vadd.f32 %v146, %v448
    %v450 = vpop.f32.mrf.mxu0
    %v451 = vadd.f32 %v146, %v450
    %452 = vmatmul.bf16.gmra.mxu0 %v260
    %v453 = vpop.f32.mrf.mxu0
    %v454 = vadd.f32 %v146, %v453
    %v455 = vpop.f32.mrf.mxu0
    %v456 = vadd.f32 %v146, %v455
    %457 = vmatmul.bf16.gmra.mxu0 %v262
    %v458 = vpop.f32.mrf.mxu0
    %v459 = vadd.f32 %v146, %v458
    %v460 = vpop.f32.mrf.mxu0
    %v461 = vadd.f32 %v146, %v460
    %462 = vmatmul.bf16.gmra.mxu0 %v264
    %v463 = vpop.f32.mrf.mxu0
    %v464 = vadd.f32 %v146, %v463
    %v465 = vpop.f32.mrf.mxu0
    %v466 = vadd.f32 %v146, %v465
    %467 = vmatmul.bf16.gmra.mxu0 %v266
    %v468 = vpop.f32.mrf.mxu0
    %v469 = vadd.f32 %v146, %v468
    %v470 = vpop.f32.mrf.mxu0
    %v471 = vadd.f32 %v146, %v470
    %472 = vmatmul.bf16.gmra.mxu0 %v268
    %v473 = vpop.f32.mrf.mxu0
    %v474 = vadd.f32 %v146, %v473
    %v475 = vpop.f32.mrf.mxu0
    %v476 = vadd.f32 %v146, %v475
    %477 = vmatmul.bf16.gmra.mxu0 %v270
    %v478 = vpop.f32.mrf.mxu0
    %v479 = vadd.f32 %v146, %v478
    %v480 = vpop.f32.mrf.mxu0
    %v481 = vadd.f32 %v146, %v480
    %482 = vmatmul.bf16.gmra.mxu0 %v272
    %v483 = vpop.f32.mrf.mxu0
    %v484 = vadd.f32 %v146, %v483
    %v485 = vpop.f32.mrf.mxu0
    %v486 = vadd.f32 %v146, %v485
    %487 = vmatmul.bf16.gmra.mxu0 %v274
    %v488 = vpop.f32.mrf.mxu0
    %v489 = vadd.f32 %v146, %v488
    %v490 = vpop.f32.mrf.mxu0
    %v491 = vadd.f32 %v146, %v490
    %492 = vdwg.mxu0
    %493 = vmatpush.bf16.msra.mxu0 %v387
    %494 = vmatpush.bf16.msra.mxu0 %v386
    %495 = vmatpush.bf16.msra.mxu0 %v385
    %496 = vmatpush.bf16.msra.mxu0 %v384
    %497 = vmatpush.bf16.msra.mxu0 %v383
    %498 = vmatpush.bf16.msra.mxu0 %v382
    %499 = vmatpush.bf16.msra.mxu0 %v381
    %500 = vmatpush.bf16.msra.mxu0 %v380
    %501 = vmatmul.bf16.gmra.mxu0 %v245
    %v502 = vpop.f32.mrf.mxu0
    %v503 = vadd.f32 %v414, %v502
    %v504 = vpop.f32.mrf.mxu0
    %v505 = vadd.f32 %v416, %v504
    %506 = vmatmul.bf16.gmra.mxu0 %v247
    %v507 = vpop.f32.mrf.mxu0
    %v508 = vadd.f32 %v419, %v507
    %v509 = vpop.f32.mrf.mxu0
    %v510 = vadd.f32 %v421, %v509
    %511 = vmatmul.bf16.gmra.mxu0 %v249
    %v512 = vpop.f32.mrf.mxu0
    %v513 = vadd.f32 %v424, %v512
    %v514 = vpop.f32.mrf.mxu0
    %v515 = vadd.f32 %v426, %v514
    %516 = vmatmul.bf16.gmra.mxu0 %v251
    %v517 = vpop.f32.mrf.mxu0
    %v518 = vadd.f32 %v429, %v517
    %v519 = vpop.f32.mrf.mxu0
    %v520 = vadd.f32 %v431, %v519
    %521 = vmatmul.bf16.gmra.mxu0 %v253
    %v522 = vpop.f32.mrf.mxu0
    %v523 = vadd.f32 %v434, %v522
    %v524 = vpop.f32.mrf.mxu0
    %v525 = vadd.f32 %v436, %v524
    %526 = vmatmul.bf16.gmra.mxu0 %v255
    %v527 = vpop.f32.mrf.mxu0
    %v528 = vadd.f32 %v439, %v527
    %v529 = vpop.f32.mrf.mxu0
    %v530 = vadd.f32 %v441, %v529
    %531 = vmatmul.bf16.gmra.mxu0 %v257
    %v532 = vpop.f32.mrf.mxu0
    %v533 = vadd.f32 %v444, %v532
    %v534 = vpop.f32.mrf.mxu0
    %v535 = vadd.f32 %v446, %v534
    %536 = vmatmul.bf16.gmra.mxu0 %v259
    %v537 = vpop.f32.mrf.mxu0
    %v538 = vadd.f32 %v449, %v537
    %v539 = vpop.f32.mrf.mxu0
    %v540 = vadd.f32 %v451, %v539
    %541 = vmatmul.bf16.gmra.mxu0 %v261
    %v542 = vpop.f32.mrf.mxu0
    %v543 = vadd.f32 %v454, %v542
    %v544 = vpop.f32.mrf.mxu0
    %v545 = vadd.f32 %v456, %v544
    %546 = vmatmul.bf16.gmra.mxu0 %v263
    %v547 = vpop.f32.mrf.mxu0
    %v548 = vadd.f32 %v459, %v547
    %v549 = vpop.f32.mrf.mxu0
    %v550 = vadd.f32 %v461, %v549
    %551 = vmatmul.bf16.gmra.mxu0 %v265
    %v552 = vpop.f32.mrf.mxu0
    %v553 = vadd.f32 %v464, %v552
    %v554 = vpop.f32.mrf.mxu0
    %v555 = vadd.f32 %v466, %v554
    %556 = vmatmul.bf16.gmra.mxu0 %v267
    %v557 = vpop.f32.mrf.mxu0
    %v558 = vadd.f32 %v469, %v557
    %v559 = vpop.f32.mrf.mxu0
    %v560 = vadd.f32 %v471, %v559
    %561 = vmatmul.bf16.gmra.mxu0 %v269
    %v562 = vpop.f32.mrf.mxu0
    %v563 = vadd.f32 %v474, %v562
    %v564 = vpop.f32.mrf.mxu0
    %v565 = vadd.f32 %v476, %v564
    %566 = vmatmul.bf16.gmra.mxu0 %v271
    %v567 = vpop.f32.mrf.mxu0
    %v568 = vadd.f32 %v479, %v567
    %v569 = vpop.f32.mrf.mxu0
    %v570 = vadd.f32 %v481, %v569
    %571 = vmatmul.bf16.gmra.mxu0 %v273
    %v572 = vpop.f32.mrf.mxu0
    %v573 = vadd.f32 %v484, %v572
    %v574 = vpop.f32.mrf.mxu0
    %v575 = vadd.f32 %v486, %v574
    %576 = vmatmul.bf16.gmra.mxu0 %v275
    %v577 = vpop.f32.mrf.mxu0
    %v578 = vadd.f32 %v489, %v577
    %v579 = vpop.f32.mrf.mxu0
    %v580 = vadd.f32 %v491, %v579
    %581 = vdwg.mxu0
    %v582 = vmax.f32 %v503, 0.0
    %v583 = vmax.f32 %v505, 0.0
    %v584 = vmax.f32 %v508, 0.0
    %v585 = vmax.f32 %v510, 0.0
    %v586 = vmax.f32 %v513, 0.0
    %v587 = vmax.f32 %v515, 0.0
    %v588 = vmax.f32 %v518, 0.0
    %v589 = vmax.f32 %v520, 0.0
    %v590 = vmax.f32 %v523, 0.0
    %v591 = vmax.f32 %v525, 0.0
    %v592 = vmax.f32 %v528, 0.0
    %v593 = vmax.f32 %v530, 0.0
    %v594 = vmax.f32 %v533, 0.0
    %v595 = vmax.f32 %v535, 0.0
    %v596 = vmax.f32 %v538, 0.0
    %v597 = vmax.f32 %v540, 0.0
    %v598 = vmax.f32 %v543, 0.0
    %v599 = vmax.f32 %v545, 0.0
    %v600 = vmax.f32 %v548, 0.0
    %v601 = vmax.f32 %v550, 0.0
    %v602 = vmax.f32 %v553, 0.0
    %v603 = vmax.f32 %v555, 0.0
    %v604 = vmax.f32 %v558, 0.0
    %v605 = vmax.f32 %v560, 0.0
    %v606 = vmax.f32 %v563, 0.0
    %v607 = vmax.f32 %v565, 0.0
    %v608 = vmax.f32 %v568, 0.0
    %v609 = vmax.f32 %v570, 0.0
    %v610 = vmax.f32 %v573, 0.0
    %v611 = vmax.f32 %v575, 0.0
    %v612 = vmax.f32 %v578, 0.0
    %v613 = vmax.f32 %v580, 0.0
    %v614 = vpack.c.bf16 %v583, %v582
    %v615 = vpack.c.bf16 %v585, %v584
    %v616 = vpack.c.bf16 %v587, %v586
    %v617 = vpack.c.bf16 %v589, %v588
    %v618 = vpack.c.bf16 %v591, %v590
    %v619 = vpack.c.bf16 %v593, %v592
    %v620 = vpack.c.bf16 %v595, %v594
    %v621 = vpack.c.bf16 %v597, %v596
    %v622 = vpack.c.bf16 %v599, %v598
    %v623 = vpack.c.bf16 %v601, %v600
    %v624 = vpack.c.bf16 %v603, %v602
    %v625 = vpack.c.bf16 %v605, %v604
    %v626 = vpack.c.bf16 %v607, %v606
    %v627 = vpack.c.bf16 %v609, %v608
    %v628 = vpack.c.bf16 %v611, %v610
    %v629 = vpack.c.bf16 %v613, %v612
    %v630 = vld [vmem:[#allocation9] sm:$0xf]
    %v631 = vld [vmem:[#allocation9 + $0x4] sm:$0xf]
    %v632 = vld [vmem:[#allocation9 + $0x8] sm:$0xf]
    %v633 = vld [vmem:[#allocation9 + $0xc] sm:$0xf]
    %v634 = vld [vmem:[#allocation9 + $0x10] sm:$0xf]
    %v635 = vld [vmem:[#allocation9 + $0x14] sm:$0xf]
    %v636 = vld [vmem:[#allocation9 + $0x18] sm:$0xf]
    %v637 = vld [vmem:[#allocation9 + $0x1c] sm:$0xf]
    %v638 = vld [vmem:[#allocation9 + $0x20] sm:$0xf]
    %v639 = vld [vmem:[#allocation9 + $0x24] sm:$0xf]
    %v640 = vld [vmem:[#allocation9 + $0x28] sm:$0xf]
    %v641 = vld [vmem:[#allocation9 + $0x2c] sm:$0xf]
    %v642 = vld [vmem:[#allocation9 + $0x30] sm:$0xf]
    %v643 = vld [vmem:[#allocation9 + $0x34] sm:$0xf]
    %v644 = vld [vmem:[#allocation9 + $0x38] sm:$0xf]
    %v645 = vld [vmem:[#allocation9 + $0x3c] sm:$0xf]
    %v662 = vunpack.c.l.b16 %v630
    %v663 = vunpack.c.l.b16 %v631
    %v664 = vunpack.c.l.b16 %v632
    %v665 = vunpack.c.l.b16 %v633
    %v666 = vunpack.c.l.b16 %v634
    %v667 = vunpack.c.l.b16 %v635
    %v668 = vunpack.c.l.b16 %v636
    %v669 = vunpack.c.l.b16 %v637
    %v670 = vunpack.c.l.b16 %v638
    %v671 = vunpack.c.l.b16 %v639
    %v672 = vunpack.c.l.b16 %v640
    %v673 = vunpack.c.l.b16 %v641
    %v674 = vunpack.c.l.b16 %v642
    %v675 = vunpack.c.l.b16 %v643
    %v676 = vunpack.c.l.b16 %v644
    %v677 = vunpack.c.l.b16 %v645
    %v678 = vpack.c.b16 %v663, %v662
    %v679 = vpack.c.b16 %v665, %v664
    %v680 = vpack.c.b16 %v667, %v666
    %v681 = vpack.c.b16 %v669, %v668
    %v682 = vpack.c.b16 %v671, %v670
    %v683 = vpack.c.b16 %v673, %v672
    %v684 = vpack.c.b16 %v675, %v674
    %v685 = vpack.c.b16 %v677, %v676
    %694 = vmatpush.bf16.msra.mxu0 %v685
    %695 = vmatpush.bf16.msra.mxu0 %v684
    %696 = vmatpush.bf16.msra.mxu0 %v683
    %697 = vmatpush.bf16.msra.mxu0 %v682
    %698 = vmatpush.bf16.msra.mxu0 %v681
    %699 = vmatpush.bf16.msra.mxu0 %v680
    %700 = vmatpush.bf16.msra.mxu0 %v679
    %701 = vmatpush.bf16.msra.mxu0 %v678
    %702 = vmatmul.bf16.gmra.mxu0 %v614
    %v703 = vpop.f32.mrf.mxu0
    %v704 = vadd.f32 0.0, %v703
    %v705 = vpop.f32.mrf.mxu0
    %v706 = vadd.f32 0.0, %v705
    %707 = vmatmul.bf16.gmra.mxu0 %v615
    %v708 = vpop.f32.mrf.mxu0
    %v709 = vadd.f32 0.0, %v708
    %v710 = vpop.f32.mrf.mxu0
    %v711 = vadd.f32 0.0, %v710
    %712 = vmatmul.bf16.gmra.mxu0 %v616
    %v713 = vpop.f32.mrf.mxu0
    %v714 = vadd.f32 0.0, %v713
    %v715 = vpop.f32.mrf.mxu0
    %v716 = vadd.f32 0.0, %v715
    %717 = vmatmul.bf16.gmra.mxu0 %v617
    %v718 = vpop.f32.mrf.mxu0
    %v719 = vadd.f32 0.0, %v718
    %v720 = vpop.f32.mrf.mxu0
    %v721 = vadd.f32 0.0, %v720
    %722 = vmatmul.bf16.gmra.mxu0 %v618
    %v723 = vpop.f32.mrf.mxu0
    %v724 = vadd.f32 0.0, %v723
    %v725 = vpop.f32.mrf.mxu0
    %v726 = vadd.f32 0.0, %v725
    %727 = vmatmul.bf16.gmra.mxu0 %v619
    %v728 = vpop.f32.mrf.mxu0
    %v729 = vadd.f32 0.0, %v728
    %v730 = vpop.f32.mrf.mxu0
    %v731 = vadd.f32 0.0, %v730
    %732 = vmatmul.bf16.gmra.mxu0 %v620
    %v733 = vpop.f32.mrf.mxu0
    %v734 = vadd.f32 0.0, %v733
    %v735 = vpop.f32.mrf.mxu0
    %v736 = vadd.f32 0.0, %v735
    %737 = vmatmul.bf16.gmra.mxu0 %v621
    %v738 = vpop.f32.mrf.mxu0
    %v739 = vadd.f32 0.0, %v738
    %v740 = vpop.f32.mrf.mxu0
    %v741 = vadd.f32 0.0, %v740
    %742 = vmatmul.bf16.gmra.mxu0 %v622
    %v743 = vpop.f32.mrf.mxu0
    %v744 = vadd.f32 0.0, %v743
    %v745 = vpop.f32.mrf.mxu0
    %v746 = vadd.f32 0.0, %v745
    %747 = vmatmul.bf16.gmra.mxu0 %v623
    %v748 = vpop.f32.mrf.mxu0
    %v749 = vadd.f32 0.0, %v748
    %v750 = vpop.f32.mrf.mxu0
    %v751 = vadd.f32 0.0, %v750
    %752 = vmatmul.bf16.gmra.mxu0 %v624
    %v753 = vpop.f32.mrf.mxu0
    %v754 = vadd.f32 0.0, %v753
    %v755 = vpop.f32.mrf.mxu0
    %v756 = vadd.f32 0.0, %v755
    %757 = vmatmul.bf16.gmra.mxu0 %v625
    %v758 = vpop.f32.mrf.mxu0
    %v759 = vadd.f32 0.0, %v758
    %v760 = vpop.f32.mrf.mxu0
    %v761 = vadd.f32 0.0, %v760
    %762 = vmatmul.bf16.gmra.mxu0 %v626
    %v763 = vpop.f32.mrf.mxu0
    %v764 = vadd.f32 0.0, %v763
    %v765 = vpop.f32.mrf.mxu0
    %v766 = vadd.f32 0.0, %v765
    %767 = vmatmul.bf16.gmra.mxu0 %v627
    %v768 = vpop.f32.mrf.mxu0
    %v769 = vadd.f32 0.0, %v768
    %v770 = vpop.f32.mrf.mxu0
    %v771 = vadd.f32 0.0, %v770
    %772 = vmatmul.bf16.gmra.mxu0 %v628
    %v773 = vpop.f32.mrf.mxu0
    %v774 = vadd.f32 0.0, %v773
    %v775 = vpop.f32.mrf.mxu0
    %v776 = vadd.f32 0.0, %v775
    %777 = vmatmul.bf16.gmra.mxu0 %v629
    %v778 = vpop.f32.mrf.mxu0
    %v779 = vadd.f32 0.0, %v778
    %v780 = vpop.f32.mrf.mxu0
    %v781 = vadd.f32 0.0, %v780
    %782 = vdwg.mxu0
    %s783 = smul.u32 0, 256
    %v784 = vpack.c.bf16 %v704, %v704
    %v785 = vpack.c.bf16 %v706, %v706
    %v786 = vpack.c.bf16 %v709, %v709
    %v787 = vpack.c.bf16 %v711, %v711
    %v788 = vpack.c.bf16 %v714, %v714
    %v789 = vpack.c.bf16 %v716, %v716
    %v790 = vpack.c.bf16 %v719, %v719
    %v791 = vpack.c.bf16 %v721, %v721
    %v792 = vpack.c.bf16 %v724, %v724
    %v793 = vpack.c.bf16 %v726, %v726
    %v794 = vpack.c.bf16 %v729, %v729
    %v795 = vpack.c.bf16 %v731, %v731
    %v796 = vpack.c.bf16 %v734, %v734
    %v797 = vpack.c.bf16 %v736, %v736
    %v798 = vpack.c.bf16 %v739, %v739
    %v799 = vpack.c.bf16 %v741, %v741
    %v800 = vpack.c.bf16 %v744, %v744
    %v801 = vpack.c.bf16 %v746, %v746
    %v802 = vpack.c.bf16 %v749, %v749
    %v803 = vpack.c.bf16 %v751, %v751
    %v804 = vpack.c.bf16 %v754, %v754
    %v805 = vpack.c.bf16 %v756, %v756
    %v806 = vpack.c.bf16 %v759, %v759
    %v807 = vpack.c.bf16 %v761, %v761
    %v808 = vpack.c.bf16 %v764, %v764
    %v809 = vpack.c.bf16 %v766, %v766
    %v810 = vpack.c.bf16 %v769, %v769
    %v811 = vpack.c.bf16 %v771, %v771
    %v812 = vpack.c.bf16 %v774, %v774
    %v813 = vpack.c.bf16 %v776, %v776
    %v814 = vpack.c.bf16 %v779, %v779
    %v815 = vpack.c.bf16 %v781, %v781
    %s816 = sshra.s32 %s783, 3
    %s817 = sand.u32 %s783, 7
    %s818 = smul.addr %s816, 4
    %s819 = scalar_lea.vmem [#allocation2], %s818
    %820 = vst [vmem:[%s819] sm:$0xf] %v784
    %821 = vst [vmem:[%s819 + $0x4] sm:$0xf] %v785
    %822 = vst [vmem:[%s819 + $0x8] sm:$0xf] %v786
    %823 = vst [vmem:[%s819 + $0xc] sm:$0xf] %v787
    %824 = vst [vmem:[%s819 + $0x10] sm:$0xf] %v788
    %825 = vst [vmem:[%s819 + $0x14] sm:$0xf] %v789
    %826 = vst [vmem:[%s819 + $0x18] sm:$0xf] %v790
    %827 = vst [vmem:[%s819 + $0x1c] sm:$0xf] %v791
    %828 = vst [vmem:[%s819 + $0x20] sm:$0xf] %v792
    %829 = vst [vmem:[%s819 + $0x24] sm:$0xf] %v793
    %830 = vst [vmem:[%s819 + $0x28] sm:$0xf] %v794
    %831 = vst [vmem:[%s819 + $0x2c] sm:$0xf] %v795
    %832 = vst [vmem:[%s819 + $0x30] sm:$0xf] %v796
    %833 = vst [vmem:[%s819 + $0x34] sm:$0xf] %v797
    %834 = vst [vmem:[%s819 + $0x38] sm:$0xf] %v798
    %835 = vst [vmem:[%s819 + $0x3c] sm:$0xf] %v799
    %836 = vst [vmem:[%s819 + $0x40] sm:$0xf] %v800
    %837 = vst [vmem:[%s819 + $0x44] sm:$0xf] %v801
    %838 = vst [vmem:[%s819 + $0x48] sm:$0xf] %v802
    %839 = vst [vmem:[%s819 + $0x4c] sm:$0xf] %v803
    %840 = vst [vmem:[%s819 + $0x50] sm:$0xf] %v804
    %841 = vst [vmem:[%s819 + $0x54] sm:$0xf] %v805
    %842 = vst [vmem:[%s819 + $0x58] sm:$0xf] %v806
    %843 = vst [vmem:[%s819 + $0x5c] sm:$0xf] %v807
    %844 = vst [vmem:[%s819 + $0x60] sm:$0xf] %v808
    %845 = vst [vmem:[%s819 + $0x64] sm:$0xf] %v809
    %846 = vst [vmem:[%s819 + $0x68] sm:$0xf] %v810
    %847 = vst [vmem:[%s819 + $0x6c] sm:$0xf] %v811
    %848 = vst [vmem:[%s819 + $0x70] sm:$0xf] %v812
    %849 = vst [vmem:[%s819 + $0x74] sm:$0xf] %v813
    %850 = vst [vmem:[%s819 + $0x78] sm:$0xf] %v814
    %851 = vst [vmem:[%s819 + $0x7c] sm:$0xf] %v815
    %v852 = vld [vmem:[#allocation3] sm:$0xff]
    %v853 = vld [vmem:[#allocation3 + $0x8] sm:$0xff]
    %v854 = vld [vmem:[%s1] sm:$0xff]
    %v855 = vld [vmem:[#allocation4] sm:$0xff]
    %v856 = vld [vmem:[#allocation4 + $0x8] sm:$0xff]
    %v857 = vld [vmem:[#allocation4 + $0x10] sm:$0xff]
    %v858 = vld [vmem:[#allocation4 + $0x18] sm:$0xff]
    %v859 = vld [vmem:[#allocation4 + $0x20] sm:$0xff]
    %v860 = vld [vmem:[#allocation4 + $0x28] sm:$0xff]
    %v861 = vld [vmem:[#allocation4 + $0x30] sm:$0xff]
    %v862 = vld [vmem:[#allocation4 + $0x38] sm:$0xff]
    %v863 = vld [vmem:[#allocation4 + $0x40] sm:$0xff]
    %v864 = vld [vmem:[#allocation4 + $0x48] sm:$0xff]
    %v865 = vld [vmem:[#allocation4 + $0x50] sm:$0xff]
    %v866 = vld [vmem:[#allocation4 + $0x58] sm:$0xff]
    %v867 = vld [vmem:[#allocation4 + $0x60] sm:$0xff]
    %v868 = vld [vmem:[#allocation4 + $0x68] sm:$0xff]
    %v869 = vld [vmem:[#allocation4 + $0x70] sm:$0xff]
    %v870 = vld [vmem:[#allocation4 + $0x78] sm:$0xff]
    %v871 = vld [vmem:[#allocation4 + $0x80] sm:$0xff]
    %v872 = vld [vmem:[#allocation4 + $0x88] sm:$0xff]
    %v873 = vld [vmem:[#allocation4 + $0x90] sm:$0xff]
    %v874 = vld [vmem:[#allocation4 + $0x98] sm:$0xff]
    %v875 = vld [vmem:[#allocation4 + $0xa0] sm:$0xff]
    %v876 = vld [vmem:[#allocation4 + $0xa8] sm:$0xff]
    %v877 = vld [vmem:[#allocation4 + $0xb0] sm:$0xff]
    %v878 = vld [vmem:[#allocation4 + $0xb8] sm:$0xff]
    %v879 = vld [vmem:[#allocation4 + $0xc0] sm:$0xff]
    %v880 = vld [vmem:[#allocation4 + $0xc8] sm:$0xff]
    %v881 = vld [vmem:[#allocation4 + $0xd0] sm:$0xff]
    %v882 = vld [vmem:[#allocation4 + $0xd8] sm:$0xff]
    %v883 = vld [vmem:[#allocation4 + $0xe0] sm:$0xff]
    %v884 = vld [vmem:[#allocation4 + $0xe8] sm:$0xff]
    %v885 = vld [vmem:[#allocation4 + $0xf0] sm:$0xff]
    %v886 = vld [vmem:[#allocation4 + $0xf8] sm:$0xff]
    %v888 = vunpack.c.l.b16 %v854
    %v889 = vunpack.c.h.b16 %v854
    %v890 = vpack.c.b16 %v888, %v888
    %v891 = vpack.c.b16 %v889, %v889
    %v926 = vunpack.c.l.b16 %v855
    %v927 = vunpack.c.h.b16 %v855
    %v928 = vunpack.c.l.b16 %v856
    %v929 = vunpack.c.h.b16 %v856
    %v930 = vunpack.c.l.b16 %v857
    %v931 = vunpack.c.h.b16 %v857
    %v932 = vunpack.c.l.b16 %v858
    %v933 = vunpack.c.h.b16 %v858
    %v934 = vunpack.c.l.b16 %v859
    %v935 = vunpack.c.h.b16 %v859
    %v936 = vunpack.c.l.b16 %v860
    %v937 = vunpack.c.h.b16 %v860
    %v938 = vunpack.c.l.b16 %v861
    %v939 = vunpack.c.h.b16 %v861
    %v940 = vunpack.c.l.b16 %v862
    %v941 = vunpack.c.h.b16 %v862
    %v942 = vunpack.c.l.b16 %v863
    %v943 = vunpack.c.h.b16 %v863
    %v944 = vunpack.c.l.b16 %v864
    %v945 = vunpack.c.h.b16 %v864
    %v946 = vunpack.c.l.b16 %v865
    %v947 = vunpack.c.h.b16 %v865
    %v948 = vunpack.c.l.b16 %v866
    %v949 = vunpack.c.h.b16 %v866
    %v950 = vunpack.c.l.b16 %v867
    %v951 = vunpack.c.h.b16 %v867
    %v952 = vunpack.c.l.b16 %v868
    %v953 = vunpack.c.h.b16 %v868
    %v954 = vunpack.c.l.b16 %v869
    %v955 = vunpack.c.h.b16 %v869
    %v956 = vunpack.c.l.b16 %v870
    %v957 = vunpack.c.h.b16 %v870
    %v958 = vunpack.c.l.b16 %v871
    %v959 = vunpack.c.h.b16 %v871
    %v960 = vunpack.c.l.b16 %v872
    %v961 = vunpack.c.h.b16 %v872
    %v962 = vunpack.c.l.b16 %v873
    %v963 = vunpack.c.h.b16 %v873
    %v964 = vunpack.c.l.b16 %v874
    %v965 = vunpack.c.h.b16 %v874
    %v966 = vunpack.c.l.b16 %v875
    %v967 = vunpack.c.h.b16 %v875
    %v968 = vunpack.c.l.b16 %v876
    %v969 = vunpack.c.h.b16 %v876
    %v970 = vunpack.c.l.b16 %v877
    %v971 = vunpack.c.h.b16 %v877
    %v972 = vunpack.c.l.b16 %v878
    %v973 = vunpack.c.h.b16 %v878
    %v974 = vunpack.c.l.b16 %v879
    %v975 = vunpack.c.h.b16 %v879
    %v976 = vunpack.c.l.b16 %v880
    %v977 = vunpack.c.h.b16 %v880
    %v978 = vunpack.c.l.b16 %v881
    %v979 = vunpack.c.h.b16 %v881
    %v980 = vunpack.c.l.b16 %v882
    %v981 = vunpack.c.h.b16 %v882
    %v982 = vunpack.c.l.b16 %v883
    %v983 = vunpack.c.h.b16 %v883
    %v984 = vunpack.c.l.b16 %v884
    %v985 = vunpack.c.h.b16 %v884
    %v986 = vunpack.c.l.b16 %v885
    %v987 = vunpack.c.h.b16 %v885
    %v988 = vunpack.c.l.b16 %v886
    %v989 = vunpack.c.h.b16 %v886
    %v990 = vpack.c.b16 %v928, %v926
    %v991 = vpack.c.b16 %v929, %v927
    %v992 = vpack.c.b16 %v932, %v930
    %v993 = vpack.c.b16 %v933, %v931
    %v994 = vpack.c.b16 %v936, %v934
    %v995 = vpack.c.b16 %v937, %v935
    %v996 = vpack.c.b16 %v940, %v938
    %v997 = vpack.c.b16 %v941, %v939
    %v998 = vpack.c.b16 %v944, %v942
    %v999 = vpack.c.b16 %v945, %v943
    %v1000 = vpack.c.b16 %v948, %v946
    %v1001 = vpack.c.b16 %v949, %v947
    %v1002 = vpack.c.b16 %v952, %v950
    %v1003 = vpack.c.b16 %v953, %v951
    %v1004 = vpack.c.b16 %v956, %v954
    %v1005 = vpack.c.b16 %v957, %v955
    %v1006 = vpack.c.b16 %v960, %v958
    %v1007 = vpack.c.b16 %v961, %v959
    %v1008 = vpack.c.b16 %v964, %v962
    %v1009 = vpack.c.b16 %v965, %v963
    %v1010 = vpack.c.b16 %v968, %v966
    %v1011 = vpack.c.b16 %v969, %v967
    %v1012 = vpack.c.b16 %v972, %v970
    %v1013 = vpack.c.b16 %v973, %v971
    %v1014 = vpack.c.b16 %v976, %v974
    %v1015 = vpack.c.b16 %v977, %v975
    %v1016 = vpack.c.b16 %v980, %v978
    %v1017 = vpack.c.b16 %v981, %v979
    %v1018 = vpack.c.b16 %v984, %v982
    %v1019 = vpack.c.b16 %v985, %v983
    %v1020 = vpack.c.b16 %v988, %v986
    %v1021 = vpack.c.b16 %v989, %v987
    %1054 = vmatpush.bf16.msra.mxu0 %v1004
    %1055 = vmatpush.bf16.msra.mxu0 %v1002
    %1056 = vmatpush.bf16.msra.mxu0 %v1000
    %1057 = vmatpush.bf16.msra.mxu0 %v998
    %1058 = vmatpush.bf16.msra.mxu0 %v996
    %1059 = vmatpush.bf16.msra.mxu0 %v994
    %1060 = vmatpush.bf16.msra.mxu0 %v992
    %1061 = vmatpush.bf16.msra.mxu0 %v990
    %1062 = vmatmul.bf16.gmra.mxu0 %v890
    %v1063 = vpop.f32.mrf.mxu0
    %v1064 = vadd.f32 0.0, %v1063
    %v1065 = vpop.f32.mrf.mxu0
    %1066 = vdwg.mxu0
    %1067 = vmatpush.bf16.msra.mxu0 %v1020
    %1068 = vmatpush.bf16.msra.mxu0 %v1018
    %1069 = vmatpush.bf16.msra.mxu0 %v1016
    %1070 = vmatpush.bf16.msra.mxu0 %v1014
    %1071 = vmatpush.bf16.msra.mxu0 %v1012
    %1072 = vmatpush.bf16.msra.mxu0 %v1010
    %1073 = vmatpush.bf16.msra.mxu0 %v1008
    %1074 = vmatpush.bf16.msra.mxu0 %v1006
    %1075 = vmatmul.bf16.gmra.mxu0 %v891
    %v1076 = vpop.f32.mrf.mxu0
    %v1077 = vadd.f32 %v1064, %v1076
    %v1078 = vpop.f32.mrf.mxu0
    %1079 = vdwg.mxu0
    %1080 = vmatpush.bf16.msra.mxu0 %v1005
    %1081 = vmatpush.bf16.msra.mxu0 %v1003
    %1082 = vmatpush.bf16.msra.mxu0 %v1001
    %1083 = vmatpush.bf16.msra.mxu0 %v999
    %1084 = vmatpush.bf16.msra.mxu0 %v997
    %1085 = vmatpush.bf16.msra.mxu0 %v995
    %1086 = vmatpush.bf16.msra.mxu0 %v993
    %1087 = vmatpush.bf16.msra.mxu0 %v991
    %1088 = vmatmul.bf16.gmra.mxu0 %v890
    %v1089 = vpop.f32.mrf.mxu0
    %v1090 = vadd.f32 0.0, %v1089
    %v1091 = vpop.f32.mrf.mxu0
    %1092 = vdwg.mxu0
    %1093 = vmatpush.bf16.msra.mxu0 %v1021
    %1094 = vmatpush.bf16.msra.mxu0 %v1019
    %1095 = vmatpush.bf16.msra.mxu0 %v1017
    %1096 = vmatpush.bf16.msra.mxu0 %v1015
    %1097 = vmatpush.bf16.msra.mxu0 %v1013
    %1098 = vmatpush.bf16.msra.mxu0 %v1011
    %1099 = vmatpush.bf16.msra.mxu0 %v1009
    %1100 = vmatpush.bf16.msra.mxu0 %v1007
    %1101 = vmatmul.bf16.gmra.mxu0 %v891
    %v1102 = vpop.f32.mrf.mxu0
    %v1103 = vadd.f32 %v1090, %v1102
    %v1104 = vpop.f32.mrf.mxu0
    %1105 = vdwg.mxu0
    %v1106 = vadd.f32 %v852, %v1077
    %v1107 = vadd.f32 %v853, %v1103
    %1108 = vst [vmem:[#allocation3] sm:$0xff] %v1106
    %1109 = vst [vmem:[#allocation3 + $0x8] sm:$0xff] %v1107
    // Predicated region
    $region46: #{tpu_custom_call.1} parent=1 // pred_check
      %p1110 = pneg %p74
    $region47: #{tpu_custom_call.1} parent=1 // pred_check_branch
      %1112 = sbr.rel (%p1110) target = $region49
    $region48: #{tpu_custom_call.1} parent=1 // pred_region
      %v1113 = vld [vmem:[#allocation3] sm:$0xff]
      %v1114 = vld [vmem:[#allocation3 + $0x8] sm:$0xff]
      %v1115 = vpack.c.bf16 %v1113, %v1113
      %v1116 = vpack.c.bf16 %v1114, %v1114
      %v1117 = vld [vmem:[#allocation2] sm:$0xf]
      %v1118 = vld [vmem:[#allocation2 + $0x4] sm:$0xf]
      %v1119 = vld [vmem:[#allocation2 + $0x8] sm:$0xf]
      %v1120 = vld [vmem:[#allocation2 + $0xc] sm:$0xf]
      %v1121 = vld [vmem:[#allocation2 + $0x10] sm:$0xf]
      %v1122 = vld [vmem:[#allocation2 + $0x14] sm:$0xf]
      %v1123 = vld [vmem:[#allocation2 + $0x18] sm:$0xf]
      %v1124 = vld [vmem:[#allocation2 + $0x1c] sm:$0xf]
      %v1125 = vld [vmem:[#allocation2 + $0x20] sm:$0xf]
      %v1126 = vld [vmem:[#allocation2 + $0x24] sm:$0xf]
      %v1127 = vld [vmem:[#allocation2 + $0x28] sm:$0xf]
      %v1128 = vld [vmem:[#allocation2 + $0x2c] sm:$0xf]
      %v1129 = vld [vmem:[#allocation2 + $0x30] sm:$0xf]
      %v1130 = vld [vmem:[#allocation2 + $0x34] sm:$0xf]
      %v1131 = vld [vmem:[#allocation2 + $0x38] sm:$0xf]
      %v1132 = vld [vmem:[#allocation2 + $0x3c] sm:$0xf]
      %v1133 = vld [vmem:[#allocation2 + $0x40] sm:$0xf]
      %v1134 = vld [vmem:[#allocation2 + $0x44] sm:$0xf]
      %v1135 = vld [vmem:[#allocation2 + $0x48] sm:$0xf]
      %v1136 = vld [vmem:[#allocation2 + $0x4c] sm:$0xf]
      %v1137 = vld [vmem:[#allocation2 + $0x50] sm:$0xf]
      %v1138 = vld [vmem:[#allocation2 + $0x54] sm:$0xf]
      %v1139 = vld [vmem:[#allocation2 + $0x58] sm:$0xf]
      %v1140 = vld [vmem:[#allocation2 + $0x5c] sm:$0xf]
      %v1141 = vld [vmem:[#allocation2 + $0x60] sm:$0xf]
      %v1142 = vld [vmem:[#allocation2 + $0x64] sm:$0xf]
      %v1143 = vld [vmem:[#allocation2 + $0x68] sm:$0xf]
      %v1144 = vld [vmem:[#allocation2 + $0x6c] sm:$0xf]
      %v1145 = vld [vmem:[#allocation2 + $0x70] sm:$0xf]
      %v1146 = vld [vmem:[#allocation2 + $0x74] sm:$0xf]
      %v1147 = vld [vmem:[#allocation2 + $0x78] sm:$0xf]
      %v1148 = vld [vmem:[#allocation2 + $0x7c] sm:$0xf]
      %v1149 = vld [vmem:[%s6] sm:$0xff]
      %v1150 = vld [vmem:[%s5] sm:$0x1]
      %1152 = vset.pattern.permute.xlu0 0
      %1153 = vperm.xlu0 %1152, %v1149
      %v1154 = vpop.permute.xlu0 %1153
      %v1157 = vperm.slane %v1150, 0
      %v1159 = vmul.f32 %v1154, %v1157
      %v1192 = vunpack.c.l.b16 %v1117
      %v1193 = vunpack.c.l.b16 %v1118
      %v1194 = vunpack.c.l.b16 %v1119
      %v1195 = vunpack.c.l.b16 %v1120
      %v1196 = vunpack.c.l.b16 %v1121
      %v1197 = vunpack.c.l.b16 %v1122
      %v1198 = vunpack.c.l.b16 %v1123
      %v1199 = vunpack.c.l.b16 %v1124
      %v1200 = vunpack.c.l.b16 %v1125
      %v1201 = vunpack.c.l.b16 %v1126
      %v1202 = vunpack.c.l.b16 %v1127
      %v1203 = vunpack.c.l.b16 %v1128
      %v1204 = vunpack.c.l.b16 %v1129
      %v1205 = vunpack.c.l.b16 %v1130
      %v1206 = vunpack.c.l.b16 %v1131
      %v1207 = vunpack.c.l.b16 %v1132
      %v1208 = vunpack.c.l.b16 %v1133
      %v1209 = vunpack.c.l.b16 %v1134
      %v1210 = vunpack.c.l.b16 %v1135
      %v1211 = vunpack.c.l.b16 %v1136
      %v1212 = vunpack.c.l.b16 %v1137
      %v1213 = vunpack.c.l.b16 %v1138
      %v1214 = vunpack.c.l.b16 %v1139
      %v1215 = vunpack.c.l.b16 %v1140
      %v1216 = vunpack.c.l.b16 %v1141
      %v1217 = vunpack.c.l.b16 %v1142
      %v1218 = vunpack.c.l.b16 %v1143
      %v1219 = vunpack.c.l.b16 %v1144
      %v1220 = vunpack.c.l.b16 %v1145
      %v1221 = vunpack.c.l.b16 %v1146
      %v1222 = vunpack.c.l.b16 %v1147
      %v1223 = vunpack.c.l.b16 %v1148
      %v1224 = vpack.c.b16 %v1193, %v1192
      %v1225 = vpack.c.b16 %v1195, %v1194
      %v1226 = vpack.c.b16 %v1197, %v1196
      %v1227 = vpack.c.b16 %v1199, %v1198
      %v1228 = vpack.c.b16 %v1201, %v1200
      %v1229 = vpack.c.b16 %v1203, %v1202
      %v1230 = vpack.c.b16 %v1205, %v1204
      %v1231 = vpack.c.b16 %v1207, %v1206
      %v1232 = vpack.c.b16 %v1209, %v1208
      %v1233 = vpack.c.b16 %v1211, %v1210
      %v1234 = vpack.c.b16 %v1213, %v1212
      %v1235 = vpack.c.b16 %v1215, %v1214
      %v1236 = vpack.c.b16 %v1217, %v1216
      %v1237 = vpack.c.b16 %v1219, %v1218
      %v1238 = vpack.c.b16 %v1221, %v1220
      %v1239 = vpack.c.b16 %v1223, %v1222
      %1256 = vmatpush.bf16.msra.mxu0 %v1231
      %1257 = vmatpush.bf16.msra.mxu0 %v1230
      %1258 = vmatpush.bf16.msra.mxu0 %v1229
      %1259 = vmatpush.bf16.msra.mxu0 %v1228
      %1260 = vmatpush.bf16.msra.mxu0 %v1227
      %1261 = vmatpush.bf16.msra.mxu0 %v1226
      %1262 = vmatpush.bf16.msra.mxu0 %v1225
      %1263 = vmatpush.bf16.msra.mxu0 %v1224
      %1264 = vmatmul.bf16.gmra.mxu0 %v1115
      %v1265 = vpop.f32.mrf.mxu0
      %v1266 = vadd.f32 %v1159, %v1265
      %v1267 = vpop.f32.mrf.mxu0
      %1268 = vdwg.mxu0
      %1269 = vmatpush.bf16.msra.mxu0 %v1239
      %1270 = vmatpush.bf16.msra.mxu0 %v1238
      %1271 = vmatpush.bf16.msra.mxu0 %v1237
      %1272 = vmatpush.bf16.msra.mxu0 %v1236
      %1273 = vmatpush.bf16.msra.mxu0 %v1235
      %1274 = vmatpush.bf16.msra.mxu0 %v1234
      %1275 = vmatpush.bf16.msra.mxu0 %v1233
      %1276 = vmatpush.bf16.msra.mxu0 %v1232
      %1277 = vmatmul.bf16.gmra.mxu0 %v1116
      %v1278 = vpop.f32.mrf.mxu0
      %v1279 = vadd.f32 %v1266, %v1278
      %v1280 = vpop.f32.mrf.mxu0
      %1281 = vdwg.mxu0
      %1282 = vst [vmem:[#allocation10] sm:$0xff] %v1279
    $region49: #{tpu_custom_call.1} parent=1 // pred_fallthru
      _
    // Predicated region
    $region50: #{tpu_custom_call.1} parent=1 // pred_check
      _
    $region51: #{tpu_custom_call.1} parent=1 // pred_check_branch
      %1284 = sbr.rel (0) target = $region53
    $region52: #{tpu_custom_call.1} parent=1 // pred_region
      %1286 = vsyncadd [#allocation6], 0
      %s1288 = sshll.u32 [#allocation10], 4
      %s1289 = int_to_ptr.vmem [resolvable:$true] %s1288
      %s1290 = sshll.u32 %s7, 4
      %s1291 = int_to_ptr.hbm [resolvable:$true] %s1290
      %1293 = dma.vmem_to_hbm [thread:$0]  %s1289, 128, %s1291, [#allocation6]
    $region53: #{tpu_custom_call.1} parent=1 // pred_fallthru
      _
    // Predicated region
    $region54: #{tpu_custom_call.1} parent=1 // pred_check
      _
    $region55: #{tpu_custom_call.1} parent=1 // pred_check_branch
      %1295 = sbr.rel (0) target = $region57
    $region56: #{tpu_custom_call.1} parent=1 // pred_region
      %1297 = dma.done [#allocation6], 128
    $region57: #{tpu_custom_call.1} parent=1 // pred_fallthru
      _
    %1298 = vsyncpa [#allocation5], 1
    %1299 = vsyncpa [#allocation8], 1
    %1300 = vsyncpa [#allocation6], 1

</llo_original>
